<compile_context>
chip_gen: v7x
topology: tpu7x:2x2x1
jax: 0.10.0
libtpu: 0.0.40
codegen_flags: <defaults>
</compile_context>

<pallas_src>
import functools
import math

import jax
import jax.numpy as jnp
from jax import lax
from jax.experimental import pallas as pl
from jax.experimental.pallas import tpu as pltpu

ALPHA = 0.1  # module default; alpha > 0


def _cdiv(a, b):
    return -(-a // b)


def _round_up(n, m):
    return ((n + m - 1) // m) * m


# ----------------------------------------------------------------- kernels --
def _leaky_relu_y_kernel(x_ref, y_ref, *, alpha):
    x = x_ref[...]
    # torch: mask = x > 0 ; y = where(mask, x, x * alpha)
    y_ref[...] = jnp.where(x > 0, x, x * alpha)


def _leaky_relu_y_ld_kernel(x_ref, y_ref, ld_ref, *, alpha, log_alpha, lane_dense):
    j = pl.program_id(1)          # feature-block index (reduction axis for ld)
    x = x_ref[...]
    neg = x <= 0                  # complement of torch's (x > 0) mask
    y_ref[...] = jnp.where(neg, x * alpha, x)

    # Per-row logdet contribution of this feature block, accumulated in f32.
    nf = neg.astype(jnp.float32)
    if lane_dense:
        # ones(1, D) contracted against mask(rows, D) on its last dim gives a
        # (1, rows) row-sum directly in lane orientation (MXU is idle here).
        ones = jnp.ones((1, nf.shape[1]), jnp.float32)
        cnt = lax.dot_general(ones, nf, (((1,), (1,)), ((), ())),
                              preferred_element_type=jnp.float32)  # (1, rows)
    else:
        cnt = jnp.sum(nf, axis=1, keepdims=True)                    # (rows, 1)
    part = (cnt * log_alpha).astype(ld_ref.dtype)

    @pl.when(j == 0)
    def _init():
        ld_ref[...] = part

    @pl.when(j > 0)
    def _accum():
        ld_ref[...] += part


# -------------------------------------------------------- block heuristics --
def _tpu_topology():
    """(tensorcores_per_chip, vmem_capacity_bytes) with safe fallbacks."""
    num_cores, vmem_cap = 1, 128 << 20
    try:
        info = pltpu.get_tpu_info()
        vmem_cap = int(getattr(info, "vmem_capacity_bytes", vmem_cap) or vmem_cap)
        for attr in ("num_cores", "core_count", "num_tensorcores",
                     "tensorcore_count", "cores_per_chip"):
            val = getattr(info, attr, None)
            if val:
                num_cores = int(val)
                break
    except Exception:  # conservative defaults when query is unavailable
        pass
    return num_cores, vmem_cap


def _auto_blocks(B, D, itemsize, num_cores, vmem_cap, exact_d):
    sub = max(8, 32 // itemsize)                 # sublane tile: 8 f32 / 16 bf16 / 32 i8
    # VMEM budget for 2x double-buffered (x + y) blocks + headroom, kept well
    # under physical VMEM (v5e/v6e 128 MiB -> 48 MiB; v7x 64 MiB -> 40 MiB).
    cap = min(48 << 20, (vmem_cap * 5) // 8)
    max_block_bytes = max(512 << 10, (cap - (4 << 20)) // 4)
    target_bytes = min(8 << 20, max_block_bytes)  # 4-8 MiB blocks ~ HBM roofline

    # Feature (lane) tiling: keep the full row when it fits; otherwise tile D
    # in multiples of 128 lanes (v7x-safe for very wide feature dims).
    if D <= 256 or D * itemsize * sub <= target_bytes:
        d_block = D
    else:
        d_block = ((target_bytes // (sub * itemsize)) // 128) * 128
        d_block = int(max(128, min(d_block, (D // 128) * 128)))
        if exact_d and D % d_block != 0:
            # logdet accumulates across feature blocks: need exact division.
            while d_block > 128 and D % d_block != 0:
                d_block -= 128
            if D % d_block != 0:
                d_block = D

    row_bytes = max(1, d_block * itemsize)
    block_rows = max(sub, ((target_bytes // row_bytes) // sub) * sub)
    b_ceil = _round_up(B, sub)
    block_rows = min(block_rows, b_ceil)

    # Chip-aware split: only on multi-TensorCore chips keep >=2 grid steps per
    # core for DMA/compute overlap; never split on 1-TC chips, and only when
    # each piece still moves >= 1 MiB.
    min_steps = 2 * num_cores if num_cores > 1 else 1
    if min_steps > 1 and _cdiv(B, block_rows) < min_steps:
        if b_ceil * row_bytes >= min_steps * (1 << 20):
            block_rows = max(sub, (_cdiv(b_ceil, min_steps) // sub) * sub)

    # When several row blocks exist, keep block_rows a multiple of 128 so the
    # lane-dense logdet block satisfies the (8,128) lane constraint.
    if _cdiv(B, block_rows) > 1 and block_rows >= 128:
        block_rows = (block_rows // 128) * 128

    return block_rows, d_block


def _vmem_limit(block_rows, d_block, itemsize, vmem_cap):
    block_bytes = block_rows * d_block * itemsize
    return int(min(max(4 * block_bytes + (4 << 20), 8 << 20), (vmem_cap * 7) // 8))


def _best_lane_width(n, max_width=16384):
    """Largest multiple of 128 that divides n (n % 128 == 0 assumed)."""
    for m in range(min(max_width // 128, n // 128), 0, -1):
        if n % (m * 128) == 0:
            return m * 128
    return 128


# ---------------------------------------------------------- pallas drivers --
def _pallas_leaky_relu_2d(x, alpha, block_rows=None, d_block=None):
    """y-only path on a 2-D array (pure elementwise)."""
    B, D = x.shape
    itemsize = jnp.dtype(x.dtype).itemsize
    sub = max(8, 32 // itemsize)
    num_cores, vmem_cap = _tpu_topology()
    auto_rows, auto_d = _auto_blocks(B, D, itemsize, num_cores, vmem_cap, exact_d=False)
    block_rows = auto_rows if block_rows is None else max(sub, _round_up(block_rows, sub))
    d_block = auto_d if d_block is None else d_block

    grid = (_cdiv(B, block_rows), _cdiv(D, d_block))
    spec = pl.BlockSpec((block_rows, d_block), lambda i, j: (i, j))
    return pl.pallas_call(
        functools.partial(_leaky_relu_y_kernel, alpha=float(alpha)),
        out_shape=jax.ShapeDtypeStruct((B, D), x.dtype),
        grid_spec=pltpu.PrefetchScalarGridSpec(
            num_scalar_prefetch=0, grid=grid, in_specs=[spec], out_specs=spec),
        compiler_params=pltpu.CompilerParams(
            dimension_semantics=("parallel", "parallel"),
            vmem_limit_bytes=_vmem_limit(block_rows, d_block, itemsize, vmem_cap)),
        cost_estimate=pl.CostEstimate(
            flops=2 * B * D, transcendentals=0, bytes_accessed=2 * B * D * itemsize),
    )(x)


def _pallas_leaky_relu_logdet(x, alpha, block_rows=None, d_block=None):
    B, D = x.shape
    itemsize = jnp.dtype(x.dtype).itemsize
    sub = max(8, 32 // itemsize)
    num_cores, vmem_cap = _tpu_topology()
    auto_rows, auto_d = _auto_blocks(B, D, itemsize, num_cores, vmem_cap, exact_d=True)
    block_rows = auto_rows if block_rows is None else max(sub, _round_up(block_rows, sub))
    d_block = auto_d if d_block is None else d_block
    if D % d_block != 0:
        d_block = D  # ld accumulates across feature blocks -> need exact split

    n_row_blocks = _cdiv(B, block_rows)
    n_d_blocks = _cdiv(D, d_block)
    rows_padded = n_row_blocks * block_rows
    # Lane-dense (1, rows) logdet layout whenever the (8,128) lane constraint
    # allows it; otherwise fall back to the (rows, 1) column layout.
    lane_dense = (n_row_blocks == 1) or (block_rows % 128 == 0)

    x_spec = pl.BlockSpec((block_rows, d_block), lambda i, j: (i, j))
    y_spec = pl.BlockSpec((block_rows, d_block), lambda i, j: (i, j))
    if lane_dense:
        ld_shape = (1, rows_padded)
        ld_spec = pl.BlockSpec((1, block_rows), lambda i, j: (0, i))
    else:
        ld_shape = (rows_padded, 1)
        ld_spec = pl.BlockSpec((block_rows, 1), lambda i, j: (i, 0))

    kernel = functools.partial(
        _leaky_relu_y_ld_kernel, alpha=float(alpha),
        log_alpha=float(math.log(alpha)), lane_dense=lane_dense)

    y, ld = pl.pallas_call(
        kernel,
        out_shape=(jax.ShapeDtypeStruct((B, D), x.dtype),
                   jax.ShapeDtypeStruct(ld_shape, jnp.float32)),
        grid_spec=pltpu.PrefetchScalarGridSpec(
            num_scalar_prefetch=0, grid=(n_row_blocks, n_d_blocks),
            in_specs=[x_spec], out_specs=[y_spec, ld_spec]),
        compiler_params=pltpu.CompilerParams(
            dimension_semantics=("parallel", "arbitrary"),
            vmem_limit_bytes=_vmem_limit(block_rows, d_block, itemsize, vmem_cap)),
        cost_estimate=pl.CostEstimate(
            flops=3 * B * D, transcendentals=0,
            bytes_accessed=2 * B * D * itemsize + 4 * B),
    )(x)
    ld = ld[0, :B] if lane_dense else ld[:B, 0]
    return y, ld


# ----------------------------------------------------------------- wrapper --
def leaky_relu_flow_forward(x, alpha=ALPHA, logdetJ=False, block_rows=None, d_block=None):
    """Forward pass of LeakyReluFLow. x: (B, D); logdet sums over dim=1."""
    assert alpha > 0, "Alpha should be greater than 0"
    assert x.ndim == 2, "expected (batch, features)"
    B, D = x.shape
    if not logdetJ:
        n = B * D
        if block_rows is None and d_block is None and D % 128 != 0 and n % 128 == 0:
            # Lane-dense re-view: the op is elementwise, so flattening to a
            # wide multiple-of-128 last dim is pure layout plumbing (free
            # under jit) and turns masked partial stores into full-width ones.
            k = _best_lane_width(n)
            y = _pallas_leaky_relu_2d(x.reshape(n // k, k), alpha)
            return y.reshape(B, D)
        return _pallas_leaky_relu_2d(x, alpha, block_rows, d_block)
    return _pallas_leaky_relu_logdet(x, alpha, block_rows, d_block)


# --------------------------------------------------------------- reference --
def _reference(x, alpha=ALPHA, logdetJ=False):
    mask = x > 0
    y = jnp.where(mask, x, x * alpha)
    if logdetJ:
        neg = jnp.logical_not(mask).astype(jnp.float32)
        return y, neg.sum(axis=1) * jnp.float32(math.log(alpha))
    return y


if __name__ == "__main__":
    fwd = jax.jit(leaky_relu_flow_forward,
                  static_argnames=("alpha", "logdetJ", "block_rows", "d_block"))

    # 1) f32, ragged batch (grid boundary masking + lane-dense logdet, single block)
    x = jax.random.normal(jax.random.PRNGKey(0), (10, 96), dtype=jnp.float32)
    y, ld = fwd(x, logdetJ=True)
    jax.block_until_ready((y, ld))
    y_ref, ld_ref = _reference(x, logdetJ=True)
    assert y.shape == (10, 96) and ld.shape == (10,)
    assert jnp.allclose(y, y_ref, atol=1e-6), "y mismatch (case 1)"
    assert jnp.allclose(ld, ld_ref, atol=1e-3), "logdet mismatch (case 1)"

    # 2) y-only, same input (ragged lane dim; 960 % 128 != 0 so no re-view)
    y2 = fwd(x, logdetJ=False)
    jax.block_until_ready(y2)
    assert jnp.allclose(y2, y_ref, atol=1e-6), "y mismatch (case 2)"

    # 3) y-only where the lane-dense re-view kicks in (16*96 = 1536 % 128 == 0)
    x3 = jax.random.normal(jax.random.PRNGKey(1), (16, 96), dtype=jnp.float32)
    y3 = fwd(x3, logdetJ=False)
    jax.block_until_ready(y3)
    assert jnp.allclose(y3, _reference(x3), atol=1e-6), "y mismatch (case 3)"

    # 4) bf16 input (packed sublane alignment, f32 logdet accumulation)
    x4 = jax.random.normal(jax.random.PRNGKey(2), (16, 64), dtype=jnp.bfloat16)
    y4, ld4 = fwd(x4, logdetJ=True)
    jax.block_until_ready((y4, ld4))
    y4_ref, ld4_ref = _reference(x4, logdetJ=True)
    assert jnp.allclose(y4.astype(jnp.float32), y4_ref.astype(jnp.float32),
                        atol=1e-2), "bf16 y mismatch (case 4)"
    assert jnp.allclose(ld4, ld4_ref, atol=1e-3), "bf16 logdet mismatch (case 4)"

    # 5) forced multi row-block + feature-block accumulation (column ld layout)
    x5 = jax.random.normal(jax.random.PRNGKey(3), (40, 256), dtype=jnp.float32)
    y5, ld5 = fwd(x5, logdetJ=True, block_rows=16, d_block=128)
    jax.block_until_ready((y5, ld5))
    y5_ref, ld5_ref = _reference(x5, logdetJ=True)
    assert jnp.allclose(y5, y5_ref, atol=1e-6), "y mismatch (case 5)"
    assert jnp.allclose(ld5, ld5_ref, atol=1e-3), "logdet mismatch (case 5)"

    # 6) forced multi row-block with lane-dense ld (block_rows % 128 == 0)
    x6 = jax.random.normal(jax.random.PRNGKey(4), (300, 128), dtype=jnp.float32)
    y6, ld6 = fwd(x6, logdetJ=True, block_rows=128)
    jax.block_until_ready((y6, ld6))
    y6_ref, ld6_ref = _reference(x6, logdetJ=True)
    assert jnp.allclose(y6, y6_ref, atol=1e-6), "y mismatch (case 6)"
    assert jnp.allclose(ld6, ld6_ref, atol=1e-3), "logdet mismatch (case 6)"

    print("KERNEL_OK")
</pallas_src>

<mosaic_0001>
module attributes {stable_mosaic.version = 11 : i64} {
  func.func @_leaky_relu_y_ld_kernel(%arg0: i32, %arg1: i32, %arg2: memref<16x96xf32, #tpu.memory_space<vmem>>, %arg3: memref<16x96xf32, #tpu.memory_space<vmem>>, %arg4: memref<1x16xf32, #tpu.memory_space<vmem>>) attributes {dimension_semantics = [#tpu.dimension_semantics<parallel>, #tpu.dimension_semantics<arbitrary>], iteration_bounds = array<i64: 1, 1>, scalar_prefetch = 0 : i64, scratch_operands = 0 : i64, tpu.core_type = #tpu.core_type<tc>, window_params = [{transform_indices = @transform_0, window_bounds = array<i64: 16, 96>}, {transform_indices = @transform_1, window_bounds = array<i64: 16, 96>}, {transform_indices = @transform_2, window_bounds = array<i64: 1, 16>}]} {
    %c0 = arith.constant 0 : index
    %c0_0 = arith.constant 0 : index
    %0 = vector.load %arg2[%c0, %c0_0] : memref<16x96xf32, #tpu.memory_space<vmem>>, vector<16x96xf32>
    %cst = arith.constant 0.000000e+00 : f32
    %1 = vector.broadcast %cst : f32 to vector<16x96xf32>
    %2 = arith.cmpf ole, %0, %1 : vector<16x96xf32>
    %cst_1 = arith.constant 1.000000e-01 : f32
    %3 = vector.broadcast %cst_1 : f32 to vector<16x96xf32>
    %4 = arith.mulf %0, %3 : vector<16x96xf32>
    %5 = arith.select %2, %4, %0 : vector<16x96xi1>, vector<16x96xf32>
    %c0_2 = arith.constant 0 : index
    %c0_3 = arith.constant 0 : index
    %6 = vector.load %arg3[%c0_2, %c0_3] : memref<16x96xf32, #tpu.memory_space<vmem>>, vector<16x96xf32>
    tpu.vector_store %arg3[%c0_2, %c0_3], %5 {strides = array<i32>} : memref<16x96xf32, #tpu.memory_space<vmem>>, vector<16x96xf32>,
    %7 = arith.extui %2 : vector<16x96xi1> to vector<16x96xi32>
    %8 = arith.sitofp %7 : vector<16x96xi32> to vector<16x96xf32>
    %cst_4 = arith.constant 1.000000e+00 : f32
    %9 = vector.broadcast %cst_4 : f32 to vector<1x96xf32>
    %cst_5 = arith.constant dense<0.000000e+00> : vector<1x16xf32>
    %10 = tpu.matmul %9, %8, %cst_5 {dimension_numbers = #tpu.dot_dimension_numbers<[1], [1], [0], [0], [0, 0, 1, 0], [], []>} : vector<1x96xf32>, vector<16x96xf32>, vector<1x16xf32> -> vector<1x16xf32>
    %cst_6 = arith.constant -2.30258512 : f32
    %11 = vector.broadcast %cst_6 : f32 to vector<1x16xf32>
    %12 = arith.mulf %10, %11 : vector<1x16xf32>
    %c0_i32 = arith.constant 0 : i32
    %13 = arith.cmpi eq, %arg1, %c0_i32 : i32
    %14 = arith.extui %13 : i1 to i32
    %c0_i32_7 = arith.constant 0 : i32
    %15 = arith.cmpi ne, %14, %c0_i32_7 : i32
    scf.if %15 {
      %c0_10 = arith.constant 0 : index
      %c0_11 = arith.constant 0 : index
      %19 = vector.load %arg4[%c0_10, %c0_11] : memref<1x16xf32, #tpu.memory_space<vmem>>, vector<1x16xf32>
      tpu.vector_store %arg4[%c0_10, %c0_11], %12 {strides = array<i32>} : memref<1x16xf32, #tpu.memory_space<vmem>>, vector<1x16xf32>,
    } else {
    }
    %c0_i32_8 = arith.constant 0 : i32
    %16 = arith.cmpi sgt, %arg1, %c0_i32_8 : i32
    %17 = arith.extui %16 : i1 to i32
    %c0_i32_9 = arith.constant 0 : i32
    %18 = arith.cmpi ne, %17, %c0_i32_9 : i32
    scf.if %18 {
      %c0_10 = arith.constant 0 : index
      %c0_11 = arith.constant 0 : index
      %19 = vector.load %arg4[%c0_10, %c0_11] : memref<1x16xf32, #tpu.memory_space<vmem>>, vector<1x16xf32>
      %20 = arith.addf %19, %12 : vector<1x16xf32>
      %c0_12 = arith.constant 0 : index
      %c0_13 = arith.constant 0 : index
      %21 = vector.load %arg4[%c0_12, %c0_13] : memref<1x16xf32, #tpu.memory_space<vmem>>, vector<1x16xf32>
      tpu.vector_store %arg4[%c0_12, %c0_13], %20 {strides = array<i32>} : memref<1x16xf32, #tpu.memory_space<vmem>>, vector<1x16xf32>,
    } else {
    }
    return
  }
  func.func @transform_0(%arg0: i32, %arg1: i32) -> (i32, i32) {
    %c0_i32 = arith.constant 0 : i32
    return %arg0, %arg1 : i32, i32
  }
  func.func @transform_1(%arg0: i32, %arg1: i32) -> (i32, i32) {
    %c0_i32 = arith.constant 0 : i32
    return %arg0, %arg1 : i32, i32
  }
  func.func @transform_2(%arg0: i32, %arg1: i32) -> (i32, i32) {
    %c0_i32 = arith.constant 0 : i32
    %c0_i32_0 = arith.constant 0 : i32
    return %c0_i32, %arg0 : i32, i32
  }
}

</mosaic_0001>

<llo_original>
// kernel: leaky_relu_flow_forward.1
$region0: #{leaky_relu_flow_forward.1}
  #allocation0 [shape = 'u32[]', space=smem, size = 0x4, offset = 0x4, fixed_abs, tag = 'smem constant byte address 0x4 - core index']
  #allocation1 [shape = 'u32[144,128]{1,0:T(1,128)}', space=vmem, size = 0x12000, scoped, tag = 'internal scratch']
  %s0 = inlined_call_operand.hbm [shape: f32[10,96], index: 0, kind: input, shape index: {}]
  %s1 = inlined_call_operand.hbm [shape: f32[10,96], index: 1, kind: output, shape index: {0}]
  %s2 = inlined_call_operand.vmem [shape: f32[1,16], index: 2, kind: output, shape index: {1}]
  %3 = xla_tuple %s1, %s2
  %s4 = sld [smem:[#allocation0]]
  $region34: #{leaky_relu_flow_forward.1} parent=0
    _
  %s6 = ssub.s32 1, %s4
  %s7 = scalar_select 0, %s6, %s4
  $region1: #{leaky_relu_flow_forward.1} parent=0
    #allocation2 [shape = 'u8[8192]{0}', space=vmem, size = 0x2000, scoped, tag = 'input window, operand 0, single buffered']
    #allocation3 [shape = 's32[1]{0}', space=sflag, size = 0x4, scoped, tag = 'scoped memory for leaky_relu_flow_forward.1']
    #allocation4 [shape = 's32[1]{0}', space=sflag, size = 0x4, scoped, tag = 'scoped memory for leaky_relu_flow_forward.1']
    #allocation5 [shape = 'u8[8192]{0}', space=vmem, size = 0x2000, scoped, tag = 'output window, operand 0, single buffered']
    %8 = vsyncpa [#allocation3], 0
    %9 = vsyncpa [#allocation4], 0
    // Predicated region
    $region2: #{leaky_relu_flow_forward.1} parent=1 // pred_check
      _
    $region3: #{leaky_relu_flow_forward.1} parent=1 // pred_check_branch
      %11 = sbr.rel (0) target = $region5
    $region4: #{leaky_relu_flow_forward.1} parent=1 // pred_region
      %s13 = ssub.s32 256, 256
      %14 = vsyncadd [#allocation3], %s13
      %s15 = sshll.u32 [#allocation2], 4
      %s16 = int_to_ptr.vmem [resolvable:$true] %s15
      %21 = dma.hbm_to_vmem [thread:$0]  %s0, 256, %s16, [#allocation3], 128, 128, 8
    $region5: #{leaky_relu_flow_forward.1} parent=1 // pred_fallthru
      _
    // Predicated region
    $region6: #{leaky_relu_flow_forward.1} parent=1 // pred_check
      _
    $region7: #{leaky_relu_flow_forward.1} parent=1 // pred_check_branch
      %23 = sbr.rel (0) target = $region9
    $region8: #{leaky_relu_flow_forward.1} parent=1 // pred_region
      %24 = dma.done [#allocation3], 256
    $region9: #{leaky_relu_flow_forward.1} parent=1 // pred_fallthru
      _
    %v25 = vld [vmem:[#allocation2] sm:$0xff]
    %v26 = vld [vmem:[#allocation2 + $0x8] sm:$0xff]
    %vm27 = vcmp.le.f32.partialorder %v25, 0.0
    %vm28 = vcmp.le.f32.partialorder %v26, 0.0
    %v29 = vmul.f32 %v25, 0.1
    %v30 = vmul.f32 %v26, 0.1
    %v31 = vsel %vm27, %v29, %v25
    %v32 = vsel %vm28, %v30, %v26
    %vm33 = vcmask 785408
    %34 = vst.msk [vmem:[#allocation5] sm:$0xff] %vm33, %v31
    %35 = vst.msk [vmem:[#allocation5 + $0x8] sm:$0xff] %vm33, %v32
    %v36 = vsel %vm27, 1, 0
    %v37 = vsel %vm28, 1, 0
    %v38 = vcvt.s32.f32 %v36
    %v39 = vcvt.s32.f32 %v37
    %v41 = vsel %vm33, 1.0, 0
    %v44 = vsel %vm33, %v38, 0
    %v47 = vsel %vm33, %v39, 0
    %49 = vmatprep.subr.mxu0 0.0
    %50 = vmatpush1.xpose.msra.mxu0 %v44
    %51 = vmatprep.subr.mxu0 0.0
    %52 = vmatpush1.xpose.msra.mxu0 %v47
    %53 = vmatprep.subr.mxu0 0.0
    %54 = vmatpush1.xpose.msra.mxu0 0.0
    %55 = vmatprep.subr.mxu0 0.0
    %56 = vmatpush1.xpose.msra.mxu0 0.0
    %57 = vmatprep.subr.mxu0 0.0
    %58 = vmatpush1.xpose.msra.mxu0 0.0
    %59 = vmatprep.subr.mxu0 0.0
    %60 = vmatpush1.xpose.msra.mxu0 0.0
    %61 = vmatprep.subr.mxu0 0.0
    %62 = vmatpush1.xpose.msra.mxu0 0.0
    %63 = vmatprep.subr.mxu0 0.0
    %64 = vmatpush1.xpose.msra.mxu0 0.0
    %65 = vmatprep.subr.mxu0 0.0
    %66 = vmatpush1.xpose.msra.mxu0 0.0
    %67 = vmatprep.subr.mxu0 0.0
    %68 = vmatpush1.xpose.msra.mxu0 0.0
    %69 = vmatprep.subr.mxu0 0.0
    %70 = vmatpush1.xpose.msra.mxu0 0.0
    %71 = vmatprep.subr.mxu0 0.0
    %72 = vmatpush1.xpose.msra.mxu0 0.0
    %73 = vmatprep.subr.mxu0 0.0
    %74 = vmatpush1.xpose.msra.mxu0 0.0
    %75 = vmatprep.subr.mxu0 0.0
    %76 = vmatpush1.xpose.msra.mxu0 0.0
    %77 = vmatprep.subr.mxu0 0.0
    %78 = vmatpush1.xpose.msra.mxu0 0.0
    %79 = vmatprep.subr.mxu0 0.0
    %80 = vmatpush1.xpose.msra.mxu0 0.0
    %81 = vmatprep.subr.mxu0 0.0
    %82 = vmatpush1.xpose.msra.mxu0 0.0
    %83 = vmatprep.subr.mxu0 0.0
    %84 = vmatpush1.xpose.msra.mxu0 0.0
    %85 = vmatprep.subr.mxu0 0.0
    %86 = vmatpush1.xpose.msra.mxu0 0.0
    %87 = vmatprep.subr.mxu0 0.0
    %88 = vmatpush1.xpose.msra.mxu0 0.0
    %89 = vmatprep.subr.mxu0 0.0
    %90 = vmatpush1.xpose.msra.mxu0 0.0
    %91 = vmatprep.subr.mxu0 0.0
    %92 = vmatpush1.xpose.msra.mxu0 0.0
    %93 = vmatprep.subr.mxu0 0.0
    %94 = vmatpush1.xpose.msra.mxu0 0.0
    %95 = vmatprep.subr.mxu0 0.0
    %96 = vmatpush1.xpose.msra.mxu0 0.0
    %97 = vmatprep.subr.mxu0 0.0
    %98 = vmatpush1.xpose.msra.mxu0 0.0
    %99 = vmatprep.subr.mxu0 0.0
    %100 = vmatpush1.xpose.msra.mxu0 0.0
    %101 = vmatprep.subr.mxu0 0.0
    %102 = vmatpush1.xpose.msra.mxu0 0.0
    %103 = vmatprep.subr.mxu0 0.0
    %104 = vmatpush1.xpose.msra.mxu0 0.0
    %105 = vmatprep.subr.mxu0 0.0
    %106 = vmatpush1.xpose.msra.mxu0 0.0
    %107 = vmatprep.subr.mxu0 0.0
    %108 = vmatpush1.xpose.msra.mxu0 0.0
    %109 = vmatprep.subr.mxu0 0.0
    %110 = vmatpush1.xpose.msra.mxu0 0.0
    %111 = vmatprep.subr.mxu0 0.0
    %112 = vmatpush1.xpose.msra.mxu0 0.0
    %113 = vmatprep.mubr.f32.mxu0 0.0
    %114 = vmatmul.mubr.f32.gmra.mrb[0].mxu0 %v41
    %v115 = vpop.f32.mrb[0].mxu0
    %v116 = vadd.f32 0.0, %v115
    %v117 = vpop.f32.mrb[0].mxu0
    %118 = vdwg.mxu0
    %v119 = vmul.f32 %v116, -2.3025851
    %p120 = scmp.eq.s32.totalorder 0, 0
    // Predicated region
    $region10: #{leaky_relu_flow_forward.1} parent=1 // pred_check
      %p121 = pneg %p120
    $region11: #{leaky_relu_flow_forward.1} parent=1 // pred_check_branch
      %123 = sbr.rel (%p121) target = $region13
    $region12: #{leaky_relu_flow_forward.1} parent=1 // pred_region
      %vm124 = vcmask 122880
      %125 = vst.msk [vmem:[%s2] sm:$0x1] %vm124, %v119
    $region13: #{leaky_relu_flow_forward.1} parent=1 // pred_fallthru
      _
    %p126 = scmp.gt.s32.totalorder 0, 0
    // Predicated region
    $region14: #{leaky_relu_flow_forward.1} parent=1 // pred_check
      %p127 = pneg %p126
    $region15: #{leaky_relu_flow_forward.1} parent=1 // pred_check_branch
      %129 = sbr.rel (%p127) target = $region17
    $region16: #{leaky_relu_flow_forward.1} parent=1 // pred_region
      %v130 = vld [vmem:[%s2] sm:$0x1]
      %v131 = vadd.f32 %v130, %v119
      %vm132 = vcmask 122880
      %133 = vst.msk [vmem:[%s2] sm:$0x1] %vm132, %v131
    $region17: #{leaky_relu_flow_forward.1} parent=1 // pred_fallthru
      _
    // Predicated region
    $region18: #{leaky_relu_flow_forward.1} parent=1 // pred_check
      _
    $region19: #{leaky_relu_flow_forward.1} parent=1 // pred_check_branch
      %135 = sbr.rel (0) target = $region21
    $region20: #{leaky_relu_flow_forward.1} parent=1 // pred_region
      %s137 = ssub.s32 256, 256
      %138 = vsyncadd [#allocation4], %s137
      %s139 = sshll.u32 [#allocation5], 4
      %s140 = int_to_ptr.vmem [resolvable:$true] %s139
      %145 = dma.vmem_to_hbm [thread:$0]  %s140, 256, %s1, [#allocation4], 128, 128, 8
    $region21: #{leaky_relu_flow_forward.1} parent=1 // pred_fallthru
      _
    // Predicated region
    $region22: #{leaky_relu_flow_forward.1} parent=1 // pred_check
      _
    $region23: #{leaky_relu_flow_forward.1} parent=1 // pred_check_branch
      %147 = sbr.rel (0) target = $region25
    $region24: #{leaky_relu_flow_forward.1} parent=1 // pred_region
      _
    $region25: #{leaky_relu_flow_forward.1} parent=1 // pred_fallthru
      _
    // Predicated region
    $region26: #{leaky_relu_flow_forward.1} parent=1 // pred_check
      _
    $region27: #{leaky_relu_flow_forward.1} parent=1 // pred_check_branch
      %149 = sbr.rel (0) target = $region29
    $region28: #{leaky_relu_flow_forward.1} parent=1 // pred_region
      %150 = dma.done [#allocation4], 256
    $region29: #{leaky_relu_flow_forward.1} parent=1 // pred_fallthru
      _
    // Predicated region
    $region30: #{leaky_relu_flow_forward.1} parent=1 // pred_check
      _
    $region31: #{leaky_relu_flow_forward.1} parent=1 // pred_check_branch
      %152 = sbr.rel (0) target = $region33
    $region32: #{leaky_relu_flow_forward.1} parent=1 // pred_region
      _
    $region33: #{leaky_relu_flow_forward.1} parent=1 // pred_fallthru
      _
    %153 = vsyncpa [#allocation3], 1
    %154 = vsyncpa [#allocation4], 1

</llo_original>
